<compile_context>
chip_gen: v5e
topology: v5e:2x2
jax: 0.10.0
libtpu: 0.0.40
codegen_flags: <defaults>
</compile_context>

<pallas_src>
import jax
import jax.numpy as jnp
from jax.experimental import pallas as pl
from jax.experimental.pallas import tpu as pltpu  # noqa: F401  (TPU backend)

# "settings" from the original repo are not available; small deterministic sizes.
STATE_SIZE = 32
ACTOR_SIZE_1 = 64   # settings.actor_size_1
ACTOR_SIZE_2 = 64   # settings.actor_size_2
ACTION_SIZE = 8
BATCH = 8

_BN_EPS = 1e-5
_OUT_PAD = 128      # lane-dense padded output width (multiple of 128 lanes)


# ----------------------------------------------------------------------------- kernel
def actor_kernel(x_ref, w1_ref, w2_ref, w3_ref, vec_ref, o_ref):
    x = x_ref[...]                       # (B, STATE_SIZE) f32, no cast needed
    v = vec_ref[...]                     # (8, 128): packed per-layer vectors

    # static row slices of the packed vector tile
    b1, g1, be1 = v[0:1, :ACTOR_SIZE_1], v[1:2, :ACTOR_SIZE_1], v[2:3, :ACTOR_SIZE_1]
    b2, g2, be2 = v[3:4, :ACTOR_SIZE_2], v[4:5, :ACTOR_SIZE_2], v[5:6, :ACTOR_SIZE_2]
    b3 = v[6:7, :]                       # (1, 128), zero-padded beyond ACTION_SIZE

    inv_b = jnp.float32(1.0 / x_ref.shape[0])

    def bn_relu(h, gamma, beta):
        # one-pass batch stats (biased variance), folded into a single scale/shift
        mean = jnp.sum(h, axis=0, keepdims=True) * inv_b
        ex2 = jnp.sum(h * h, axis=0, keepdims=True) * inv_b
        var = ex2 - mean * mean
        s = gamma * jax.lax.rsqrt(var + _BN_EPS)
        return jnp.maximum(h * s + (beta - mean * s), 0.0)

    # Layer 1: Linear -> BN -> ReLU
    h = jnp.dot(x, w1_ref[...], preferred_element_type=jnp.float32) + b1
    h = bn_relu(h, g1, be1)

    # Layer 2: Linear -> BN -> ReLU
    h = jnp.dot(h, w2_ref[...], preferred_element_type=jnp.float32) + b2
    h = bn_relu(h, g2, be2)

    # Layer 3: Linear -> Tanh   (128 lane-padded; padded columns are exactly 0)
    h = jnp.dot(h, w3_ref[...], preferred_element_type=jnp.float32) + b3
    o_ref[...] = jnp.tanh(h)


# ----------------------------------------------------------------------------- wrapper
def _full_spec(shape):
    # single-tile block spec: block == whole array (grid is empty)
    return pl.BlockSpec(shape, lambda: (0,) * len(shape))


@jax.jit
def actor_net_forward(x, kernel_params):
    w1, w2, w3p, vecs = kernel_params
    B = x.shape[0]
    out = pl.pallas_call(
        actor_kernel,
        out_shape=jax.ShapeDtypeStruct((B, _OUT_PAD), jnp.float32),
        grid=(),
        in_specs=[_full_spec(a.shape) for a in (x, w1, w2, w3p, vecs)],
        out_specs=_full_spec((B, _OUT_PAD)),
        # default compiler params: no vmem_limit over-reservation (v7x friendly)
    )(x, w1, w2, w3p, vecs)
    return out[:, :ACTION_SIZE]


# ----------------------------------------------------------------------------- params
def init_params(key):
    """Deterministic init mirroring ActorNet.initialize_params().

    Original code: lim = 1/sqrt(weight.size()[0]) == 1/sqrt(out_features) for
    hidden layers, (-0.003, 0.003) for the output layer. Biases keep PyTorch's
    default Linear init (uniform ±1/sqrt(in_features)). Weights are stored
    transposed vs. PyTorch, i.e. (in_features, out_features), so the kernel
    computes x @ W + b on the MXU.
    """
    ks = jax.random.split(key, 6)

    def uni(k, shape, lim):
        return jax.random.uniform(k, shape, jnp.float32, minval=-lim, maxval=lim)

    lim1 = 1.0 / jnp.sqrt(jnp.float32(ACTOR_SIZE_1))
    lim2 = 1.0 / jnp.sqrt(jnp.float32(ACTOR_SIZE_2))
    lim3 = 0.003

    w1 = uni(ks[0], (STATE_SIZE, ACTOR_SIZE_1), lim1)
    b1 = uni(ks[1], (1, ACTOR_SIZE_1), 1.0 / jnp.sqrt(jnp.float32(STATE_SIZE)))
    w2 = uni(ks[2], (ACTOR_SIZE_1, ACTOR_SIZE_2), lim2)
    b2 = uni(ks[3], (1, ACTOR_SIZE_2), 1.0 / jnp.sqrt(jnp.float32(ACTOR_SIZE_1)))
    w3 = uni(ks[4], (ACTOR_SIZE_2, ACTION_SIZE), lim3)
    b3 = uni(ks[5], (1, ACTION_SIZE), 1.0 / jnp.sqrt(jnp.float32(ACTOR_SIZE_2)))

    # BatchNorm affine params (PyTorch default init: gamma=1, beta=0)
    g1 = jnp.ones((1, ACTOR_SIZE_1), jnp.float32)
    be1 = jnp.zeros((1, ACTOR_SIZE_1), jnp.float32)
    g2 = jnp.ones((1, ACTOR_SIZE_2), jnp.float32)
    be2 = jnp.zeros((1, ACTOR_SIZE_2), jnp.float32)

    return (w1, b1, g1, be1, w2, b2, g2, be2, w3, b3)


def pack_params(params):
    """Pack small per-layer vectors into one (8,128) tile and lane-pad w3/b3."""
    (w1, b1, g1, be1, w2, b2, g2, be2, w3, b3) = params

    w3p = jnp.zeros((ACTOR_SIZE_2, _OUT_PAD), jnp.float32).at[:, :ACTION_SIZE].set(w3)

    def pad_row(vec):
        row = jnp.zeros((1, _OUT_PAD), jnp.float32)
        return row.at[:, : vec.shape[-1]].set(vec.reshape(1, -1))

    vecs = jnp.concatenate(
        [pad_row(b1), pad_row(g1), pad_row(be1),
         pad_row(b2), pad_row(g2), pad_row(be2),
         pad_row(b3), jnp.zeros((1, _OUT_PAD), jnp.float32)],
        axis=0,
    )  # (8, 128)

    return (w1, w2, w3p, vecs)


# ----------------------------------------------------------------------------- reference
def reference_forward(x, params):
    # pure-JAX reference (two-pass batch-norm, canonical definition)
    (w1, b1, g1, be1, w2, b2, g2, be2, w3, b3) = params

    def bn(h, gamma, beta):
        mean = jnp.mean(h, axis=0, keepdims=True)
        var = jnp.mean((h - mean) ** 2, axis=0, keepdims=True)
        return (h - mean) * jax.lax.rsqrt(var + _BN_EPS) * gamma + beta

    h = x @ w1 + b1
    h = jnp.maximum(bn(h, g1, be1), 0.0)
    h = h @ w2 + b2
    h = jnp.maximum(bn(h, g2, be2), 0.0)
    h = h @ w3 + b3
    return jnp.tanh(h)


if __name__ == "__main__":
    key = jax.random.PRNGKey(0)
    kx, kp = jax.random.split(key)
    x = jax.random.normal(kx, (BATCH, STATE_SIZE), jnp.float32)

    params = init_params(kp)
    kernel_params = pack_params(params)

    out = jax.block_until_ready(actor_net_forward(x, kernel_params))
    ref = reference_forward(x, params)

    assert out.shape == (BATCH, ACTION_SIZE)
    assert jnp.allclose(out, ref, atol=1e-4, rtol=1e-4), "mismatch vs JAX reference"

    print("KERNEL_OK")
</pallas_src>

<mosaic_0001>
module attributes {stable_mosaic.version = 11 : i64} {
  func.func @actor_kernel(%arg0: memref<8x32xf32, #tpu.memory_space<vmem>>, %arg1: memref<32x64xf32, #tpu.memory_space<vmem>>, %arg2: memref<64x64xf32, #tpu.memory_space<vmem>>, %arg3: memref<64x128xf32, #tpu.memory_space<vmem>>, %arg4: memref<8x128xf32, #tpu.memory_space<vmem>>, %arg5: memref<8x128xf32, #tpu.memory_space<vmem>>) attributes {dimension_semantics = [], scalar_prefetch = 0 : i64, scratch_operands = 0 : i64, tpu.core_type = #tpu.core_type<tc>} {
    %c0 = arith.constant 0 : index
    %c0_0 = arith.constant 0 : index
    %0 = vector.load %arg0[%c0, %c0_0] : memref<8x32xf32, #tpu.memory_space<vmem>>, vector<8x32xf32>
    %c0_1 = arith.constant 0 : index
    %c0_2 = arith.constant 0 : index
    %1 = vector.load %arg4[%c0_1, %c0_2] : memref<8x128xf32, #tpu.memory_space<vmem>>, vector<8x128xf32>
    %2 = vector.extract_strided_slice %1 {offsets = [0, 0], sizes = [1, 64], strides = [1, 1]} : vector<8x128xf32> to vector<1x64xf32>
    %3 = vector.extract_strided_slice %1 {offsets = [1, 0], sizes = [1, 64], strides = [1, 1]} : vector<8x128xf32> to vector<1x64xf32>
    %4 = vector.extract_strided_slice %1 {offsets = [2, 0], sizes = [1, 64], strides = [1, 1]} : vector<8x128xf32> to vector<1x64xf32>
    %5 = vector.extract_strided_slice %1 {offsets = [3, 0], sizes = [1, 64], strides = [1, 1]} : vector<8x128xf32> to vector<1x64xf32>
    %6 = vector.extract_strided_slice %1 {offsets = [4, 0], sizes = [1, 64], strides = [1, 1]} : vector<8x128xf32> to vector<1x64xf32>
    %7 = vector.extract_strided_slice %1 {offsets = [5, 0], sizes = [1, 64], strides = [1, 1]} : vector<8x128xf32> to vector<1x64xf32>
    %8 = vector.extract_strided_slice %1 {offsets = [6, 0], sizes = [1, 128], strides = [1, 1]} : vector<8x128xf32> to vector<1x128xf32>
    %c0_3 = arith.constant 0 : index
    %c0_4 = arith.constant 0 : index
    %9 = vector.load %arg1[%c0_3, %c0_4] : memref<32x64xf32, #tpu.memory_space<vmem>>, vector<32x64xf32>
    %cst = arith.constant dense<0.000000e+00> : vector<8x64xf32>
    %10 = tpu.matmul %0, %9, %cst {dimension_numbers = #tpu.dot_dimension_numbers<[1], [0], [0], [1], [0, 0, 1, 1], [], []>} : vector<8x32xf32>, vector<32x64xf32>, vector<8x64xf32> -> vector<8x64xf32>
    %11 = vector.broadcast %2 : vector<1x64xf32> to vector<8x64xf32>
    %12 = arith.addf %10, %11 : vector<8x64xf32>
    %cst_5 = arith.constant dense<0.000000e+00> : vector<64xf32>
    %13 = vector.multi_reduction <add>, %12, %cst_5 [0] : vector<8x64xf32> to vector<64xf32>
    %14 = vector.shape_cast %13 : vector<64xf32> to vector<1x64xf32>
    %cst_6 = arith.constant 1.250000e-01 : f32
    %15 = vector.broadcast %cst_6 : f32 to vector<1x64xf32>
    %16 = arith.mulf %14, %15 : vector<1x64xf32>
    %17 = arith.mulf %12, %12 : vector<8x64xf32>
    %cst_7 = arith.constant dense<0.000000e+00> : vector<64xf32>
    %18 = vector.multi_reduction <add>, %17, %cst_7 [0] : vector<8x64xf32> to vector<64xf32>
    %19 = vector.shape_cast %18 : vector<64xf32> to vector<1x64xf32>
    %cst_8 = arith.constant 1.250000e-01 : f32
    %20 = vector.broadcast %cst_8 : f32 to vector<1x64xf32>
    %21 = arith.mulf %19, %20 : vector<1x64xf32>
    %22 = arith.mulf %16, %16 : vector<1x64xf32>
    %23 = arith.subf %21, %22 : vector<1x64xf32>
    %cst_9 = arith.constant 9.99999974E-6 : f32
    %24 = vector.broadcast %cst_9 : f32 to vector<1x64xf32>
    %25 = arith.addf %23, %24 : vector<1x64xf32>
    %26 = math.rsqrt %25 : vector<1x64xf32>
    %27 = arith.mulf %3, %26 : vector<1x64xf32>
    %28 = vector.broadcast %27 : vector<1x64xf32> to vector<8x64xf32>
    %29 = arith.mulf %12, %28 : vector<8x64xf32>
    %30 = arith.mulf %16, %27 : vector<1x64xf32>
    %31 = arith.subf %4, %30 : vector<1x64xf32>
    %32 = vector.broadcast %31 : vector<1x64xf32> to vector<8x64xf32>
    %33 = arith.addf %29, %32 : vector<8x64xf32>
    %cst_10 = arith.constant 0.000000e+00 : f32
    %34 = vector.broadcast %cst_10 : f32 to vector<8x64xf32>
    %35 = arith.maximumf %33, %34 : vector<8x64xf32>
    %c0_11 = arith.constant 0 : index
    %c0_12 = arith.constant 0 : index
    %36 = vector.load %arg2[%c0_11, %c0_12] : memref<64x64xf32, #tpu.memory_space<vmem>>, vector<64x64xf32>
    %cst_13 = arith.constant dense<0.000000e+00> : vector<8x64xf32>
    %37 = tpu.matmul %35, %36, %cst_13 {dimension_numbers = #tpu.dot_dimension_numbers<[1], [0], [0], [1], [0, 0, 1, 1], [], []>} : vector<8x64xf32>, vector<64x64xf32>, vector<8x64xf32> -> vector<8x64xf32>
    %38 = vector.broadcast %5 : vector<1x64xf32> to vector<8x64xf32>
    %39 = arith.addf %37, %38 : vector<8x64xf32>
    %cst_14 = arith.constant dense<0.000000e+00> : vector<64xf32>
    %40 = vector.multi_reduction <add>, %39, %cst_14 [0] : vector<8x64xf32> to vector<64xf32>
    %41 = vector.shape_cast %40 : vector<64xf32> to vector<1x64xf32>
    %cst_15 = arith.constant 1.250000e-01 : f32
    %42 = vector.broadcast %cst_15 : f32 to vector<1x64xf32>
    %43 = arith.mulf %41, %42 : vector<1x64xf32>
    %44 = arith.mulf %39, %39 : vector<8x64xf32>
    %cst_16 = arith.constant dense<0.000000e+00> : vector<64xf32>
    %45 = vector.multi_reduction <add>, %44, %cst_16 [0] : vector<8x64xf32> to vector<64xf32>
    %46 = vector.shape_cast %45 : vector<64xf32> to vector<1x64xf32>
    %cst_17 = arith.constant 1.250000e-01 : f32
    %47 = vector.broadcast %cst_17 : f32 to vector<1x64xf32>
    %48 = arith.mulf %46, %47 : vector<1x64xf32>
    %49 = arith.mulf %43, %43 : vector<1x64xf32>
    %50 = arith.subf %48, %49 : vector<1x64xf32>
    %cst_18 = arith.constant 9.99999974E-6 : f32
    %51 = vector.broadcast %cst_18 : f32 to vector<1x64xf32>
    %52 = arith.addf %50, %51 : vector<1x64xf32>
    %53 = math.rsqrt %52 : vector<1x64xf32>
    %54 = arith.mulf %6, %53 : vector<1x64xf32>
    %55 = vector.broadcast %54 : vector<1x64xf32> to vector<8x64xf32>
    %56 = arith.mulf %39, %55 : vector<8x64xf32>
    %57 = arith.mulf %43, %54 : vector<1x64xf32>
    %58 = arith.subf %7, %57 : vector<1x64xf32>
    %59 = vector.broadcast %58 : vector<1x64xf32> to vector<8x64xf32>
    %60 = arith.addf %56, %59 : vector<8x64xf32>
    %cst_19 = arith.constant 0.000000e+00 : f32
    %61 = vector.broadcast %cst_19 : f32 to vector<8x64xf32>
    %62 = arith.maximumf %60, %61 : vector<8x64xf32>
    %c0_20 = arith.constant 0 : index
    %c0_21 = arith.constant 0 : index
    %63 = vector.load %arg3[%c0_20, %c0_21] : memref<64x128xf32, #tpu.memory_space<vmem>>, vector<64x128xf32>
    %cst_22 = arith.constant dense<0.000000e+00> : vector<8x128xf32>
    %64 = tpu.matmul %62, %63, %cst_22 {dimension_numbers = #tpu.dot_dimension_numbers<[1], [0], [0], [1], [0, 0, 1, 1], [], []>} : vector<8x64xf32>, vector<64x128xf32>, vector<8x128xf32> -> vector<8x128xf32>
    %65 = vector.broadcast %8 : vector<1x128xf32> to vector<8x128xf32>
    %66 = arith.addf %64, %65 : vector<8x128xf32>
    %67 = math.tanh %66 : vector<8x128xf32>
    %c0_23 = arith.constant 0 : index
    %c0_24 = arith.constant 0 : index
    %68 = vector.load %arg5[%c0_23, %c0_24] : memref<8x128xf32, #tpu.memory_space<vmem>>, vector<8x128xf32>
    tpu.vector_store %arg5[%c0_23, %c0_24], %67 {strides = array<i32>} : memref<8x128xf32, #tpu.memory_space<vmem>>, vector<8x128xf32>,
    return
  }
}

</mosaic_0001>

<llo_original>
// kernel: actor_net_forward.1
$region0: #{actor_net_forward.1}
  #allocation0 [shape = 'u32[]', space=smem, size = 0x4, offset = 0x4, fixed_abs, tag = 'smem constant byte address 0x4 - core index']
  #allocation1 [shape = 'u32[72,128]{1,0:T(1,128)}', space=vmem, size = 0x9000, scoped, tag = 'internal scratch']
  %s0 = inlined_call_operand.hbm [shape: f32[8,32], index: 0, kind: input, shape index: {}]
  %s1 = inlined_call_operand.hbm [shape: f32[32,64], index: 1, kind: input, shape index: {}]
  %s2 = inlined_call_operand.hbm [shape: f32[64,64], index: 2, kind: input, shape index: {}]
  %s3 = inlined_call_operand.hbm [shape: f32[64,128], index: 3, kind: input, shape index: {}]
  %s4 = inlined_call_operand.hbm [shape: f32[8,128], index: 4, kind: input, shape index: {}]
  %s5 = inlined_call_operand.hbm [shape: f32[8,128], index: 5, kind: output, shape index: {}]
  %s6 = sld [smem:[#allocation0]]
  $region50: #{actor_net_forward.1} parent=0
    _
  %s8 = ssub.s32 1, %s6
  %s9 = scalar_select 0, %s8, %s6
  $region1: #{actor_net_forward.1} parent=0
    #allocation2 [shape = 'u8[4096]{0}', space=vmem, size = 0x1000, scoped, tag = 'input window, operand 0, single buffered']
    #allocation3 [shape = 's32[1]{0}', space=sflag, size = 0x4, scoped, tag = 'scoped memory for actor_net_forward.1']
    #allocation4 [shape = 's32[1]{0}', space=sflag, size = 0x4, scoped, tag = 'scoped memory for actor_net_forward.1']
    #allocation5 [shape = 'u8[16384]{0}', space=vmem, size = 0x4000, scoped, tag = 'input window, operand 1, single buffered']
    #allocation6 [shape = 's32[1]{0}', space=sflag, size = 0x4, scoped, tag = 'scoped memory for actor_net_forward.1']
    #allocation7 [shape = 'u8[32768]{0}', space=vmem, size = 0x8000, scoped, tag = 'input window, operand 2, single buffered']
    #allocation8 [shape = 'u8[32768]{0}', space=vmem, size = 0x8000, scoped, tag = 'input window, operand 3, single buffered']
    #allocation9 [shape = 's32[1]{0}', space=sflag, size = 0x4, scoped, tag = 'scoped memory for actor_net_forward.1']
    #allocation10 [shape = 'u8[4096]{0}', space=vmem, size = 0x1000, scoped, tag = 'input window, operand 4, single buffered']
    #allocation11 [shape = 'u8[4096]{0}', space=vmem, size = 0x1000, scoped, tag = 'output window, operand 0, single buffered']
    %10 = vsyncpa [#allocation3], 0
    %11 = vsyncpa [#allocation6], 0
    %12 = vsyncpa [#allocation9], 0
    %13 = vsyncpa [#allocation4], 0
    // Predicated region
    $region2: #{actor_net_forward.1} parent=1 // pred_check
      _
    $region3: #{actor_net_forward.1} parent=1 // pred_check_branch
      %15 = sbr.rel (0) target = $region5
    $region4: #{actor_net_forward.1} parent=1 // pred_region
      %17 = vsyncadd [#allocation3], 0
      %s19 = sshll.u32 %s0, 4
      %s20 = int_to_ptr.hbm [resolvable:$true] %s19
      %s21 = sshll.u32 [#allocation2], 4
      %s22 = int_to_ptr.vmem [resolvable:$true] %s21
      %24 = dma.hbm_to_vmem [thread:$0]  %s20, 128, %s22, [#allocation3]
    $region5: #{actor_net_forward.1} parent=1 // pred_fallthru
      _
    // Predicated region
    $region6: #{actor_net_forward.1} parent=1 // pred_check
      _
    $region7: #{actor_net_forward.1} parent=1 // pred_check_branch
      %26 = sbr.rel (0) target = $region9
    $region8: #{actor_net_forward.1} parent=1 // pred_region
      %28 = vsyncadd [#allocation6], 0
      %s29 = sshll.u32 %s1, 4
      %s30 = int_to_ptr.hbm [resolvable:$true] %s29
      %s31 = sshll.u32 [#allocation5], 4
      %s32 = int_to_ptr.vmem [resolvable:$true] %s31
      %37 = dma.hbm_to_vmem [thread:$0]  %s30, 512, %s32, [#allocation6], 128, 128, 8
    $region9: #{actor_net_forward.1} parent=1 // pred_fallthru
      _
    // Predicated region
    $region10: #{actor_net_forward.1} parent=1 // pred_check
      _
    $region11: #{actor_net_forward.1} parent=1 // pred_check_branch
      %39 = sbr.rel (0) target = $region13
    $region12: #{actor_net_forward.1} parent=1 // pred_region
      %41 = vsyncadd [#allocation6], 0
      %s42 = sshll.u32 %s2, 4
      %s43 = int_to_ptr.hbm [resolvable:$true] %s42
      %s44 = sshll.u32 [#allocation7], 4
      %s45 = int_to_ptr.vmem [resolvable:$true] %s44
      %50 = dma.hbm_to_vmem [thread:$0]  %s43, 1024, %s45, [#allocation6], 128, 128, 8
    $region13: #{actor_net_forward.1} parent=1 // pred_fallthru
      _
    // Predicated region
    $region14: #{actor_net_forward.1} parent=1 // pred_check
      _
    $region15: #{actor_net_forward.1} parent=1 // pred_check_branch
      %52 = sbr.rel (0) target = $region17
    $region16: #{actor_net_forward.1} parent=1 // pred_region
      %54 = vsyncadd [#allocation9], 0
      %s55 = sshll.u32 %s3, 4
      %s56 = int_to_ptr.hbm [resolvable:$true] %s55
      %s57 = sshll.u32 [#allocation8], 4
      %s58 = int_to_ptr.vmem [resolvable:$true] %s57
      %63 = dma.hbm_to_vmem [thread:$0]  %s56, 1024, %s58, [#allocation9], 128, 128, 8
    $region17: #{actor_net_forward.1} parent=1 // pred_fallthru
      _
    // Predicated region
    $region18: #{actor_net_forward.1} parent=1 // pred_check
      _
    $region19: #{actor_net_forward.1} parent=1 // pred_check_branch
      %65 = sbr.rel (0) target = $region21
    $region20: #{actor_net_forward.1} parent=1 // pred_region
      %67 = vsyncadd [#allocation9], 0
      %s69 = sshll.u32 %s4, 4
      %s70 = int_to_ptr.hbm [resolvable:$true] %s69
      %s71 = sshll.u32 [#allocation10], 4
      %s72 = int_to_ptr.vmem [resolvable:$true] %s71
      %74 = dma.hbm_to_vmem [thread:$0]  %s70, 128, %s72, [#allocation9]
    $region21: #{actor_net_forward.1} parent=1 // pred_fallthru
      _
    // Predicated region
    $region22: #{actor_net_forward.1} parent=1 // pred_check
      _
    $region23: #{actor_net_forward.1} parent=1 // pred_check_branch
      %76 = sbr.rel (0) target = $region25
    $region24: #{actor_net_forward.1} parent=1 // pred_region
      %78 = dma.done [#allocation3], 128
    $region25: #{actor_net_forward.1} parent=1 // pred_fallthru
      _
    // Predicated region
    $region26: #{actor_net_forward.1} parent=1 // pred_check
      _
    $region27: #{actor_net_forward.1} parent=1 // pred_check_branch
      %80 = sbr.rel (0) target = $region29
    $region28: #{actor_net_forward.1} parent=1 // pred_region
      %82 = dma.done [#allocation6], 512
    $region29: #{actor_net_forward.1} parent=1 // pred_fallthru
      _
    // Predicated region
    $region30: #{actor_net_forward.1} parent=1 // pred_check
      _
    $region31: #{actor_net_forward.1} parent=1 // pred_check_branch
      %84 = sbr.rel (0) target = $region33
    $region32: #{actor_net_forward.1} parent=1 // pred_region
      %86 = dma.done [#allocation6], 1024
    $region33: #{actor_net_forward.1} parent=1 // pred_fallthru
      _
    // Predicated region
    $region34: #{actor_net_forward.1} parent=1 // pred_check
      _
    $region35: #{actor_net_forward.1} parent=1 // pred_check_branch
      %88 = sbr.rel (0) target = $region37
    $region36: #{actor_net_forward.1} parent=1 // pred_region
      %90 = dma.done [#allocation9], 1024
    $region37: #{actor_net_forward.1} parent=1 // pred_fallthru
      _
    // Predicated region
    $region38: #{actor_net_forward.1} parent=1 // pred_check
      _
    $region39: #{actor_net_forward.1} parent=1 // pred_check_branch
      %92 = sbr.rel (0) target = $region41
    $region40: #{actor_net_forward.1} parent=1 // pred_region
      %94 = dma.done [#allocation9], 128
    $region41: #{actor_net_forward.1} parent=1 // pred_fallthru
      _
    %v95 = vld [vmem:[#allocation2] sm:$0xff]
    %v96 = vld [vmem:[#allocation10] sm:$0xff]
    %v97 = vld [vmem:[#allocation5] sm:$0xff]
    %v98 = vld [vmem:[#allocation5 + $0x8] sm:$0xff]
    %v99 = vld [vmem:[#allocation5 + $0x10] sm:$0xff]
    %v100 = vld [vmem:[#allocation5 + $0x18] sm:$0xff]
    %v101 = vperm.slane %v96, 0
    %vm102 = vcmask 261120
    %v104 = vsel %vm102, %v95, 0
    %106 = vmatpush.msra.mxu0 0.0
    %107 = vmatpush.msra.mxu0 0.0
    %108 = vmatpush.msra.mxu0 0.0
    %109 = vmatpush.msra.mxu0 0.0
    %110 = vmatpush.msra.mxu0 0.0
    %111 = vmatpush.msra.mxu0 0.0
    %112 = vmatpush.msra.mxu0 0.0
    %113 = vmatpush.msra.mxu0 0.0
    %114 = vmatpush.msra.mxu0 0.0
    %115 = vmatpush.msra.mxu0 0.0
    %116 = vmatpush.msra.mxu0 0.0
    %117 = vmatpush.msra.mxu0 0.0
    %118 = vmatpush.msra.mxu0 %v100
    %119 = vmatpush.msra.mxu0 %v99
    %120 = vmatpush.msra.mxu0 %v98
    %121 = vmatpush.msra.mxu0 %v97
    %122 = vmatmul.f32.gmra.mxu0 %v104
    %v123 = vpop.f32.mrf.mxu0
    %v124 = vadd.f32 %v101, %v123
    %125 = vdwg.mxu0
    %vm126 = vcmask 523264
    %v127 = vsel %vm126, %v124, 0.0
    %v128 = vrot.slane %v127, 4
    %v129 = vadd.f32 %v127, %v128
    %v130 = vrot.slane %v129, 2
    %v131 = vadd.f32 %v129, %v130
    %v132 = vrot.slane %v131, 1
    %v133 = vadd.f32 %v131, %v132
    %v134 = vmul.f32 %v133, 0.125
    %v135 = vmul.f32 %v124, %v124
    %v136 = vsel %vm126, %v135, 0.0
    %v137 = vrot.slane %v136, 4
    %v138 = vadd.f32 %v136, %v137
    %v139 = vrot.slane %v138, 2
    %v140 = vadd.f32 %v138, %v139
    %v141 = vrot.slane %v140, 1
    %v142 = vadd.f32 %v140, %v141
    %v143 = vmul.f32 %v142, 0.125
    %v144 = vmul.f32 %v134, %v134
    %v145 = vsub.f32 %v143, %v144
    %v146 = vadd.f32 %v145, 1e-05
    %v147 = vrsqrt.pop %v146
    %v148 = vmul.f32 %v147, %v146
    %v149 = vmul.f32 %v148, %v147
    %v150 = vmul.f32 0.5, %v149
    %v151 = vsub.f32 1.5, %v150
    %v152 = vmul.f32 %v147, %v151
    %vm153 = vweird.f32 %v146
    %vm154 = vweird.f32 %v147
    %vm155 = vmor %vm153, %vm154
    %v156 = vsel %vm155, %v147, %v152
    %v157 = vmul.f32 %v96, %v156
    %v158 = vperm.slane %v157, 1
    %v159 = vmul.f32 %v124, %v158
    %v160 = vmul.f32 %v134, %v157
    %v162 = vrot.slane %v160, 7
    %v164 = vsub.f32 %v96, %v162
    %v165 = vperm.slane %v164, 2
    %v166 = vadd.f32 %v159, %v165
    %v167 = vmax.f32 %v166, 0.0
    %v168 = vld [vmem:[#allocation7] sm:$0xff]
    %v169 = vld [vmem:[#allocation7 + $0x8] sm:$0xff]
    %v170 = vld [vmem:[#allocation7 + $0x10] sm:$0xff]
    %v171 = vld [vmem:[#allocation7 + $0x18] sm:$0xff]
    %v172 = vld [vmem:[#allocation7 + $0x20] sm:$0xff]
    %v173 = vld [vmem:[#allocation7 + $0x28] sm:$0xff]
    %v174 = vld [vmem:[#allocation7 + $0x30] sm:$0xff]
    %v175 = vld [vmem:[#allocation7 + $0x38] sm:$0xff]
    %v176 = vperm.slane %v96, 3
    %v178 = vsel %vm126, %v167, 0
    %180 = vmatpush.msra.mxu0 0.0
    %181 = vmatpush.msra.mxu0 0.0
    %182 = vmatpush.msra.mxu0 0.0
    %183 = vmatpush.msra.mxu0 0.0
    %184 = vmatpush.msra.mxu0 0.0
    %185 = vmatpush.msra.mxu0 0.0
    %186 = vmatpush.msra.mxu0 0.0
    %187 = vmatpush.msra.mxu0 0.0
    %188 = vmatpush.msra.mxu0 %v175
    %189 = vmatpush.msra.mxu0 %v174
    %190 = vmatpush.msra.mxu0 %v173
    %191 = vmatpush.msra.mxu0 %v172
    %192 = vmatpush.msra.mxu0 %v171
    %193 = vmatpush.msra.mxu0 %v170
    %194 = vmatpush.msra.mxu0 %v169
    %195 = vmatpush.msra.mxu0 %v168
    %196 = vmatmul.f32.gmra.mxu0 %v178
    %v197 = vpop.f32.mrf.mxu0
    %v198 = vadd.f32 %v176, %v197
    %199 = vdwg.mxu0
    %v200 = vsel %vm126, %v198, 0.0
    %v201 = vrot.slane %v200, 4
    %v202 = vadd.f32 %v200, %v201
    %v203 = vrot.slane %v202, 2
    %v204 = vadd.f32 %v202, %v203
    %v205 = vrot.slane %v204, 1
    %v206 = vadd.f32 %v204, %v205
    %v207 = vmul.f32 %v206, 0.125
    %v208 = vmul.f32 %v198, %v198
    %v209 = vsel %vm126, %v208, 0.0
    %v210 = vrot.slane %v209, 4
    %v211 = vadd.f32 %v209, %v210
    %v212 = vrot.slane %v211, 2
    %v213 = vadd.f32 %v211, %v212
    %v214 = vrot.slane %v213, 1
    %v215 = vadd.f32 %v213, %v214
    %v216 = vmul.f32 %v215, 0.125
    %v217 = vmul.f32 %v207, %v207
    %v218 = vsub.f32 %v216, %v217
    %v219 = vadd.f32 %v218, 1e-05
    %v220 = vrsqrt.pop %v219
    %v221 = vmul.f32 %v220, %v219
    %v222 = vmul.f32 %v221, %v220
    %v223 = vmul.f32 0.5, %v222
    %v224 = vsub.f32 1.5, %v223
    %v225 = vmul.f32 %v220, %v224
    %vm226 = vweird.f32 %v219
    %vm227 = vweird.f32 %v220
    %vm228 = vmor %vm226, %vm227
    %v229 = vsel %vm228, %v220, %v225
    %v230 = vmul.f32 %v96, %v229
    %v231 = vperm.slane %v230, 4
    %v232 = vmul.f32 %v198, %v231
    %v233 = vmul.f32 %v207, %v230
    %v235 = vrot.slane %v233, 7
    %v237 = vsub.f32 %v96, %v235
    %v238 = vperm.slane %v237, 5
    %v239 = vadd.f32 %v232, %v238
    %v240 = vmax.f32 %v239, 0.0
    %v241 = vld [vmem:[#allocation8] sm:$0xff]
    %v242 = vld [vmem:[#allocation8 + $0x8] sm:$0xff]
    %v243 = vld [vmem:[#allocation8 + $0x10] sm:$0xff]
    %v244 = vld [vmem:[#allocation8 + $0x18] sm:$0xff]
    %v245 = vld [vmem:[#allocation8 + $0x20] sm:$0xff]
    %v246 = vld [vmem:[#allocation8 + $0x28] sm:$0xff]
    %v247 = vld [vmem:[#allocation8 + $0x30] sm:$0xff]
    %v248 = vld [vmem:[#allocation8 + $0x38] sm:$0xff]
    %v249 = vperm.slane %v96, 6
    %v251 = vsel %vm126, %v240, 0
    %253 = vmatpush.msra.mxu0 0.0
    %254 = vmatpush.msra.mxu0 0.0
    %255 = vmatpush.msra.mxu0 0.0
    %256 = vmatpush.msra.mxu0 0.0
    %257 = vmatpush.msra.mxu0 0.0
    %258 = vmatpush.msra.mxu0 0.0
    %259 = vmatpush.msra.mxu0 0.0
    %260 = vmatpush.msra.mxu0 0.0
    %261 = vmatpush.msra.mxu0 %v248
    %262 = vmatpush.msra.mxu0 %v247
    %263 = vmatpush.msra.mxu0 %v246
    %264 = vmatpush.msra.mxu0 %v245
    %265 = vmatpush.msra.mxu0 %v244
    %266 = vmatpush.msra.mxu0 %v243
    %267 = vmatpush.msra.mxu0 %v242
    %268 = vmatpush.msra.mxu0 %v241
    %269 = vmatmul.f32.gmra.mxu0 %v251
    %v270 = vpop.f32.mrf.mxu0
    %v271 = vadd.f32 %v249, %v270
    %272 = vdwg.mxu0
    %v273 = vtanh.pop %v271
    %274 = vst [vmem:[#allocation11] sm:$0xff] %v273
    // Predicated region
    $region42: #{actor_net_forward.1} parent=1 // pred_check
      _
    $region43: #{actor_net_forward.1} parent=1 // pred_check_branch
      %276 = sbr.rel (0) target = $region45
    $region44: #{actor_net_forward.1} parent=1 // pred_region
      %278 = vsyncadd [#allocation4], 0
      %s280 = sshll.u32 [#allocation11], 4
      %s281 = int_to_ptr.vmem [resolvable:$true] %s280
      %s282 = sshll.u32 %s5, 4
      %s283 = int_to_ptr.hbm [resolvable:$true] %s282
      %285 = dma.vmem_to_hbm [thread:$0]  %s281, 128, %s283, [#allocation4]
    $region45: #{actor_net_forward.1} parent=1 // pred_fallthru
      _
    // Predicated region
    $region46: #{actor_net_forward.1} parent=1 // pred_check
      _
    $region47: #{actor_net_forward.1} parent=1 // pred_check_branch
      %287 = sbr.rel (0) target = $region49
    $region48: #{actor_net_forward.1} parent=1 // pred_region
      %289 = dma.done [#allocation4], 128
    $region49: #{actor_net_forward.1} parent=1 // pred_fallthru
      _
    %290 = vsyncpa [#allocation3], 1
    %291 = vsyncpa [#allocation6], 1
    %292 = vsyncpa [#allocation9], 1
    %293 = vsyncpa [#allocation4], 1

</llo_original>
